<compile_context>
chip_gen: v7x
topology: tpu7x:2x2x1
jax: 0.10.0
libtpu: 0.0.40
codegen_flags: <defaults>
</compile_context>

<pallas_src>
import jax
import jax.numpy as jnp
from jax.experimental import pallas as pl
from jax.experimental.pallas import tpu as pltpu

BN_EPS = 1e-5
LEAKY_SLOPE = 0.01      # PyTorch F.leaky_relu default negative_slope
PAD = 128               # lane width; hidden/output dims are zero-padded to this
N_H = [50, 50, 30]
_PARAM_ROW0 = 120       # gamma0..2, beta0..2, fc3 bias live in w[0] rows 120..126


def _round_up(n, m):
    return (n + m - 1) // m * m


def make_mlp_kernel(in_pad):
    """Fused 4-layer MLP with training-mode BatchNorm1d + LeakyReLU.

    x_ref: (B, in_pad)      input activations (natural width, padded to x16)
    w_ref: (4, 128, 128)    zero-padded (in, out) weight slab; rows 120..126 of
                            w[0] carry gamma0..2, beta0..2, fc3 bias
    o_ref: (B, 128)         zero-padded output (sliced to out_dim by wrapper)
    """

    def mlp_kernel(x_ref, w_ref, o_ref):
        # Param rows folded into w[0]: one aligned 8-row load, cast to f32.
        pars = w_ref[0, _PARAM_ROW0:_PARAM_ROW0 + 8, :].astype(jnp.float32)

        def bn_lrelu(h, g, be):
            # Two-moment variance: both cross-sublane reductions are independent.
            mean = jnp.mean(h, axis=0, keepdims=True)
            msq = jnp.mean(h * h, axis=0, keepdims=True)
            var = jnp.maximum(msq - mean * mean, 0.0)     # biased batch variance
            scale = g * jax.lax.rsqrt(var + BN_EPS)        # fold gamma into rsqrt
            shift = be - mean * scale
            hn = h * scale + shift
            return jnp.maximum(hn, LEAKY_SLOPE * hn)       # leaky ReLU (0<slope<1)

        wdt = w_ref.dtype                                  # f32 or bf16 weights
        # First matmul contracts only the statically-sliced live rows of w[0];
        # any zero-padded x lanes hit zero weight rows (or the param rows times
        # zero), so padding contributes exactly nothing.
        h = jnp.dot(x_ref[...].astype(wdt), w_ref[0, 0:in_pad, :],
                    preferred_element_type=jnp.float32)
        h = bn_lrelu(h, pars[0:1, :], pars[3:4, :])
        h = jnp.dot(h.astype(wdt), w_ref[1], preferred_element_type=jnp.float32)
        h = bn_lrelu(h, pars[1:2, :], pars[4:5, :])
        h = jnp.dot(h.astype(wdt), w_ref[2], preferred_element_type=jnp.float32)
        h = bn_lrelu(h, pars[2:3, :], pars[5:6, :])
        o_ref[...] = (jnp.dot(h.astype(wdt), w_ref[3],
                              preferred_element_type=jnp.float32)
                      + pars[6:7, :])

    return mlp_kernel


def init_params(key, input_dim, output_dim):
    """PyTorch-like init: Linear uniform(+-1/sqrt(fan_in)); BN gamma=1, beta=0."""
    dims = [input_dim] + N_H + [output_dim]
    params = {}
    for i in range(4):
        fan_in, fan_out = dims[i], dims[i + 1]
        key, kw, kb = jax.random.split(key, 3)
        bound = 1.0 / jnp.sqrt(fan_in)
        # stored transposed relative to PyTorch: (in, out)
        params[f"w{i}"] = jax.random.uniform(
            kw, (fan_in, fan_out), jnp.float32, -bound, bound)
        params[f"b{i}"] = jax.random.uniform(
            kb, (1, fan_out), jnp.float32, -bound, bound)
    for i in range(3):
        params[f"g{i}"] = jnp.ones((1, N_H[i]), jnp.float32)    # bn weight
        params[f"be{i}"] = jnp.zeros((1, N_H[i]), jnp.float32)  # bn bias
    return params


def pack_params(params, input_dim, output_dim, dtype=jnp.float32):
    """Pack all weights + BN params + fc3 bias into ONE (4,128,128) slab.

    Call once per parameter update (outside the hot forward path); the forward
    then only passes x and this cached slab.
    """
    assert input_dim <= _PARAM_ROW0, (
        "param rows 120..126 of w[0] would collide with live weight rows")
    dims_in = [input_dim] + N_H
    dims_out = N_H + [output_dim]
    w = jnp.zeros((4, PAD, PAD), jnp.float32)
    for i in range(4):
        w = w.at[i, :dims_in[i], :dims_out[i]].set(params[f"w{i}"])
    # Fold BN gamma/beta and the fc3 bias into unused rows of w[0].
    for i in range(3):
        w = w.at[0, _PARAM_ROW0 + i, :N_H[i]].set(params[f"g{i}"].reshape(-1))
        w = w.at[0, _PARAM_ROW0 + 3 + i, :N_H[i]].set(params[f"be{i}"].reshape(-1))
    w = w.at[0, _PARAM_ROW0 + 6, :output_dim].set(params["b3"].reshape(-1))
    # b0/b1/b2 intentionally NOT packed: cancelled by training-mode BatchNorm.
    return w.astype(dtype)


def network_forward_stacked(x_stack, w_slab, output_dim):
    """Run N independent forward passes (each its own BN batch) in ONE launch.

    x_stack: (N, B, input_dim). Weights stay VMEM-resident across the grid
    (constant index_map); x/out are pipelined over the leading axis, marked
    "parallel" so v7x's two TensorCores split it.
    """
    N, B, D = x_stack.shape
    if B < 2:
        raise ValueError("training-mode BatchNorm1d needs batch size >= 2")
    in_pad = _round_up(D, 16)
    if in_pad != D:
        x_stack = jnp.pad(x_stack, ((0, 0), (0, 0), (0, in_pad - D)))

    # Whole-batch-in-one-block BN: guard the VMEM footprint (v7x: 64 MiB phys).
    w_bytes = 4 * PAD * PAD * jnp.dtype(w_slab.dtype).itemsize
    act_bytes = 2 * B * (in_pad + PAD) * 4 + 8 * B * PAD * 4
    assert w_bytes + act_bytes < (48 << 20), (
        "batch too large for single-block BN")
    # TODO(synk): for very large B switch BN to a two-pass / Welford reduction
    # over a batch grid axis instead of one whole-batch block.

    cost = pl.CostEstimate(
        flops=int(N * 2 * B * PAD * PAD * 4),
        transcendentals=int(N * 3 * PAD),
        bytes_accessed=int(w_bytes + x_stack.size * 4 + N * B * PAD * 4),
    )

    out = pl.pallas_call(
        make_mlp_kernel(in_pad),
        out_shape=jax.ShapeDtypeStruct((N, B, PAD), jnp.float32),
        grid=(N,),
        in_specs=[
            pl.BlockSpec((None, B, in_pad), lambda n: (n, 0, 0)),   # x per step
            pl.BlockSpec((4, PAD, PAD), lambda n: (0, 0, 0)),       # VMEM-resident
        ],
        out_specs=pl.BlockSpec((None, B, PAD), lambda n: (n, 0, 0)),
        compiler_params=pltpu.CompilerParams(
            dimension_semantics=("parallel",)),
        cost_estimate=cost,
    )(x_stack, w_slab)
    return out[:, :, :output_dim]


def network_forward(x, w_slab, output_dim):
    """Single forward pass over one BN batch. x: (B, input_dim)."""
    return network_forward_stacked(x[None], w_slab, output_dim)[0]


def network_reference(x, params):
    """Pure-JAX reference (biases included; BN in training mode)."""
    h = x
    for i in range(3):
        h = h @ params[f"w{i}"] + params[f"b{i}"]
        mean = jnp.mean(h, axis=0, keepdims=True)
        var = jnp.mean((h - mean) ** 2, axis=0, keepdims=True)
        hn = (h - mean) / jnp.sqrt(var + BN_EPS) * params[f"g{i}"] + params[f"be{i}"]
        h = jnp.where(hn > 0, hn, LEAKY_SLOPE * hn)
    return h @ params["w3"] + params["b3"]


if __name__ == "__main__":
    key = jax.random.PRNGKey(0)
    k_x, k_p = jax.random.split(key)

    B, input_dim, output_dim = 8, 16, 4
    x = jax.random.normal(k_x, (B, input_dim), jnp.float32)
    params = init_params(k_p, input_dim, output_dim)

    # Pack once; hot path only passes x + cached slab.
    w_f32 = pack_params(params, input_dim, output_dim, dtype=jnp.float32)

    # 1) Single forward, f32 weights (exact match to reference).
    out = jax.block_until_ready(network_forward(x, w_f32, output_dim))
    ref = network_reference(x, params)
    assert out.shape == (B, output_dim)
    assert jnp.allclose(out, ref, atol=1e-3, rtol=1e-3), "mismatch vs JAX reference"

    # 2) Multi-invocation path: N independent batches, one launch, weights
    #    VMEM-resident across the (parallel) grid axis.
    N = 4
    xs = jax.random.normal(jax.random.PRNGKey(1), (N, B, input_dim), jnp.float32)
    outs = jax.block_until_ready(network_forward_stacked(xs, w_f32, output_dim))
    refs = jnp.stack([network_reference(xs[i], params) for i in range(N)])
    assert outs.shape == (N, B, output_dim)
    assert jnp.allclose(outs, refs, atol=1e-3, rtol=1e-3), "stacked mismatch"

    # 3) bf16 weight slab (halves the weight DMA); f32 accumulation & BN math.
    #    Loose tolerance: this path trades a little precision for bandwidth.
    w_bf16 = pack_params(params, input_dim, output_dim, dtype=jnp.bfloat16)
    out_bf16 = jax.block_until_ready(network_forward(x, w_bf16, output_dim))
    assert jnp.allclose(out_bf16, ref, atol=1e-1, rtol=1e-1), "bf16 path drifted"

    print("KERNEL_OK")
</pallas_src>

<mosaic_0001>
module attributes {stable_mosaic.version = 11 : i64} {
  func.func @mlp_kernel(%arg0: i32, %arg1: memref<1x8x16xf32, #tpu.memory_space<vmem>>, %arg2: memref<4x128x128xf32, #tpu.memory_space<vmem>>, %arg3: memref<1x8x128xf32, #tpu.memory_space<vmem>>) attributes {dimension_semantics = [#tpu.dimension_semantics<parallel>], iteration_bounds = array<i64: 1>, scalar_prefetch = 0 : i64, scratch_operands = 0 : i64, tpu.core_type = #tpu.core_type<tc>, window_params = [{transform_indices = @transform_0, window_bounds = array<i64: 1, 8, 16>}, {pipeline_mode = #tpu.pipeline_mode<synchronous>, transform_indices = @transform_1, window_bounds = array<i64: 4, 128, 128>}, {transform_indices = @transform_2, window_bounds = array<i64: 1, 8, 128>}]} {
    %c0 = arith.constant 0 : index
    %c120 = arith.constant 120 : index
    %c0_0 = arith.constant 0 : index
    %0 = vector.load %arg2[%c0, %c120, %c0_0] : memref<4x128x128xf32, #tpu.memory_space<vmem>>, vector<1x8x128xf32>
    %1 = vector.shape_cast %0 : vector<1x8x128xf32> to vector<8x128xf32>
    %c0_1 = arith.constant 0 : index
    %c0_2 = arith.constant 0 : index
    %c0_3 = arith.constant 0 : index
    %2 = vector.load %arg1[%c0_1, %c0_2, %c0_3] : memref<1x8x16xf32, #tpu.memory_space<vmem>>, vector<1x8x16xf32>
    %3 = vector.shape_cast %2 : vector<1x8x16xf32> to vector<8x16xf32>
    %c0_4 = arith.constant 0 : index
    %c0_5 = arith.constant 0 : index
    %c0_6 = arith.constant 0 : index
    %4 = vector.load %arg2[%c0_4, %c0_5, %c0_6] : memref<4x128x128xf32, #tpu.memory_space<vmem>>, vector<1x16x128xf32>
    %5 = vector.shape_cast %4 : vector<1x16x128xf32> to vector<16x128xf32>
    %cst = arith.constant dense<0.000000e+00> : vector<8x128xf32>
    %6 = tpu.matmul %3, %5, %cst {dimension_numbers = #tpu.dot_dimension_numbers<[1], [0], [0], [1], [0, 0, 1, 1], [], []>} : vector<8x16xf32>, vector<16x128xf32>, vector<8x128xf32> -> vector<8x128xf32>
    %7 = vector.extract_strided_slice %1 {offsets = [0, 0], sizes = [1, 128], strides = [1, 1]} : vector<8x128xf32> to vector<1x128xf32>
    %8 = vector.extract_strided_slice %1 {offsets = [3, 0], sizes = [1, 128], strides = [1, 1]} : vector<8x128xf32> to vector<1x128xf32>
    %cst_7 = arith.constant dense<0.000000e+00> : vector<128xf32>
    %9 = vector.multi_reduction <add>, %6, %cst_7 [0] : vector<8x128xf32> to vector<128xf32>
    %10 = vector.shape_cast %9 : vector<128xf32> to vector<1x128xf32>
    %cst_8 = arith.constant 8.000000e+00 : f32
    %11 = vector.broadcast %cst_8 : f32 to vector<1x128xf32>
    %12 = arith.divf %10, %11 : vector<1x128xf32>
    %13 = arith.mulf %6, %6 : vector<8x128xf32>
    %cst_9 = arith.constant dense<0.000000e+00> : vector<128xf32>
    %14 = vector.multi_reduction <add>, %13, %cst_9 [0] : vector<8x128xf32> to vector<128xf32>
    %15 = vector.shape_cast %14 : vector<128xf32> to vector<1x128xf32>
    %cst_10 = arith.constant 8.000000e+00 : f32
    %16 = vector.broadcast %cst_10 : f32 to vector<1x128xf32>
    %17 = arith.divf %15, %16 : vector<1x128xf32>
    %18 = arith.mulf %12, %12 : vector<1x128xf32>
    %19 = arith.subf %17, %18 : vector<1x128xf32>
    %cst_11 = arith.constant 0.000000e+00 : f32
    %20 = vector.broadcast %cst_11 : f32 to vector<1x128xf32>
    %21 = arith.maximumf %19, %20 : vector<1x128xf32>
    %cst_12 = arith.constant 9.99999974E-6 : f32
    %22 = vector.broadcast %cst_12 : f32 to vector<1x128xf32>
    %23 = arith.addf %21, %22 : vector<1x128xf32>
    %24 = math.rsqrt %23 : vector<1x128xf32>
    %25 = arith.mulf %7, %24 : vector<1x128xf32>
    %26 = arith.mulf %12, %25 : vector<1x128xf32>
    %27 = arith.subf %8, %26 : vector<1x128xf32>
    %28 = vector.broadcast %25 : vector<1x128xf32> to vector<8x128xf32>
    %29 = arith.mulf %6, %28 : vector<8x128xf32>
    %30 = vector.broadcast %27 : vector<1x128xf32> to vector<8x128xf32>
    %31 = arith.addf %29, %30 : vector<8x128xf32>
    %cst_13 = arith.constant 0.00999999977 : f32
    %32 = vector.broadcast %cst_13 : f32 to vector<8x128xf32>
    %33 = arith.mulf %32, %31 : vector<8x128xf32>
    %34 = arith.maximumf %31, %33 : vector<8x128xf32>
    %c1 = arith.constant 1 : index
    %c0_14 = arith.constant 0 : index
    %c0_15 = arith.constant 0 : index
    %35 = vector.load %arg2[%c1, %c0_14, %c0_15] : memref<4x128x128xf32, #tpu.memory_space<vmem>>, vector<1x128x128xf32>
    %36 = vector.shape_cast %35 : vector<1x128x128xf32> to vector<128x128xf32>
    %cst_16 = arith.constant dense<0.000000e+00> : vector<8x128xf32>
    %37 = tpu.matmul %34, %36, %cst_16 {dimension_numbers = #tpu.dot_dimension_numbers<[1], [0], [0], [1], [0, 0, 1, 1], [], []>} : vector<8x128xf32>, vector<128x128xf32>, vector<8x128xf32> -> vector<8x128xf32>
    %38 = vector.extract_strided_slice %1 {offsets = [1, 0], sizes = [1, 128], strides = [1, 1]} : vector<8x128xf32> to vector<1x128xf32>
    %39 = vector.extract_strided_slice %1 {offsets = [4, 0], sizes = [1, 128], strides = [1, 1]} : vector<8x128xf32> to vector<1x128xf32>
    %cst_17 = arith.constant dense<0.000000e+00> : vector<128xf32>
    %40 = vector.multi_reduction <add>, %37, %cst_17 [0] : vector<8x128xf32> to vector<128xf32>
    %41 = vector.shape_cast %40 : vector<128xf32> to vector<1x128xf32>
    %cst_18 = arith.constant 8.000000e+00 : f32
    %42 = vector.broadcast %cst_18 : f32 to vector<1x128xf32>
    %43 = arith.divf %41, %42 : vector<1x128xf32>
    %44 = arith.mulf %37, %37 : vector<8x128xf32>
    %cst_19 = arith.constant dense<0.000000e+00> : vector<128xf32>
    %45 = vector.multi_reduction <add>, %44, %cst_19 [0] : vector<8x128xf32> to vector<128xf32>
    %46 = vector.shape_cast %45 : vector<128xf32> to vector<1x128xf32>
    %cst_20 = arith.constant 8.000000e+00 : f32
    %47 = vector.broadcast %cst_20 : f32 to vector<1x128xf32>
    %48 = arith.divf %46, %47 : vector<1x128xf32>
    %49 = arith.mulf %43, %43 : vector<1x128xf32>
    %50 = arith.subf %48, %49 : vector<1x128xf32>
    %cst_21 = arith.constant 0.000000e+00 : f32
    %51 = vector.broadcast %cst_21 : f32 to vector<1x128xf32>
    %52 = arith.maximumf %50, %51 : vector<1x128xf32>
    %cst_22 = arith.constant 9.99999974E-6 : f32
    %53 = vector.broadcast %cst_22 : f32 to vector<1x128xf32>
    %54 = arith.addf %52, %53 : vector<1x128xf32>
    %55 = math.rsqrt %54 : vector<1x128xf32>
    %56 = arith.mulf %38, %55 : vector<1x128xf32>
    %57 = arith.mulf %43, %56 : vector<1x128xf32>
    %58 = arith.subf %39, %57 : vector<1x128xf32>
    %59 = vector.broadcast %56 : vector<1x128xf32> to vector<8x128xf32>
    %60 = arith.mulf %37, %59 : vector<8x128xf32>
    %61 = vector.broadcast %58 : vector<1x128xf32> to vector<8x128xf32>
    %62 = arith.addf %60, %61 : vector<8x128xf32>
    %cst_23 = arith.constant 0.00999999977 : f32
    %63 = vector.broadcast %cst_23 : f32 to vector<8x128xf32>
    %64 = arith.mulf %63, %62 : vector<8x128xf32>
    %65 = arith.maximumf %62, %64 : vector<8x128xf32>
    %c2 = arith.constant 2 : index
    %c0_24 = arith.constant 0 : index
    %c0_25 = arith.constant 0 : index
    %66 = vector.load %arg2[%c2, %c0_24, %c0_25] : memref<4x128x128xf32, #tpu.memory_space<vmem>>, vector<1x128x128xf32>
    %67 = vector.shape_cast %66 : vector<1x128x128xf32> to vector<128x128xf32>
    %cst_26 = arith.constant dense<0.000000e+00> : vector<8x128xf32>
    %68 = tpu.matmul %65, %67, %cst_26 {dimension_numbers = #tpu.dot_dimension_numbers<[1], [0], [0], [1], [0, 0, 1, 1], [], []>} : vector<8x128xf32>, vector<128x128xf32>, vector<8x128xf32> -> vector<8x128xf32>
    %69 = vector.extract_strided_slice %1 {offsets = [2, 0], sizes = [1, 128], strides = [1, 1]} : vector<8x128xf32> to vector<1x128xf32>
    %70 = vector.extract_strided_slice %1 {offsets = [5, 0], sizes = [1, 128], strides = [1, 1]} : vector<8x128xf32> to vector<1x128xf32>
    %cst_27 = arith.constant dense<0.000000e+00> : vector<128xf32>
    %71 = vector.multi_reduction <add>, %68, %cst_27 [0] : vector<8x128xf32> to vector<128xf32>
    %72 = vector.shape_cast %71 : vector<128xf32> to vector<1x128xf32>
    %cst_28 = arith.constant 8.000000e+00 : f32
    %73 = vector.broadcast %cst_28 : f32 to vector<1x128xf32>
    %74 = arith.divf %72, %73 : vector<1x128xf32>
    %75 = arith.mulf %68, %68 : vector<8x128xf32>
    %cst_29 = arith.constant dense<0.000000e+00> : vector<128xf32>
    %76 = vector.multi_reduction <add>, %75, %cst_29 [0] : vector<8x128xf32> to vector<128xf32>
    %77 = vector.shape_cast %76 : vector<128xf32> to vector<1x128xf32>
    %cst_30 = arith.constant 8.000000e+00 : f32
    %78 = vector.broadcast %cst_30 : f32 to vector<1x128xf32>
    %79 = arith.divf %77, %78 : vector<1x128xf32>
    %80 = arith.mulf %74, %74 : vector<1x128xf32>
    %81 = arith.subf %79, %80 : vector<1x128xf32>
    %cst_31 = arith.constant 0.000000e+00 : f32
    %82 = vector.broadcast %cst_31 : f32 to vector<1x128xf32>
    %83 = arith.maximumf %81, %82 : vector<1x128xf32>
    %cst_32 = arith.constant 9.99999974E-6 : f32
    %84 = vector.broadcast %cst_32 : f32 to vector<1x128xf32>
    %85 = arith.addf %83, %84 : vector<1x128xf32>
    %86 = math.rsqrt %85 : vector<1x128xf32>
    %87 = arith.mulf %69, %86 : vector<1x128xf32>
    %88 = arith.mulf %74, %87 : vector<1x128xf32>
    %89 = arith.subf %70, %88 : vector<1x128xf32>
    %90 = vector.broadcast %87 : vector<1x128xf32> to vector<8x128xf32>
    %91 = arith.mulf %68, %90 : vector<8x128xf32>
    %92 = vector.broadcast %89 : vector<1x128xf32> to vector<8x128xf32>
    %93 = arith.addf %91, %92 : vector<8x128xf32>
    %cst_33 = arith.constant 0.00999999977 : f32
    %94 = vector.broadcast %cst_33 : f32 to vector<8x128xf32>
    %95 = arith.mulf %94, %93 : vector<8x128xf32>
    %96 = arith.maximumf %93, %95 : vector<8x128xf32>
    %c3 = arith.constant 3 : index
    %c0_34 = arith.constant 0 : index
    %c0_35 = arith.constant 0 : index
    %97 = vector.load %arg2[%c3, %c0_34, %c0_35] : memref<4x128x128xf32, #tpu.memory_space<vmem>>, vector<1x128x128xf32>
    %98 = vector.shape_cast %97 : vector<1x128x128xf32> to vector<128x128xf32>
    %cst_36 = arith.constant dense<0.000000e+00> : vector<8x128xf32>
    %99 = tpu.matmul %96, %98, %cst_36 {dimension_numbers = #tpu.dot_dimension_numbers<[1], [0], [0], [1], [0, 0, 1, 1], [], []>} : vector<8x128xf32>, vector<128x128xf32>, vector<8x128xf32> -> vector<8x128xf32>
    %100 = vector.extract_strided_slice %1 {offsets = [6, 0], sizes = [1, 128], strides = [1, 1]} : vector<8x128xf32> to vector<1x128xf32>
    %101 = vector.broadcast %100 : vector<1x128xf32> to vector<8x128xf32>
    %102 = arith.addf %99, %101 : vector<8x128xf32>
    %c0_37 = arith.constant 0 : index
    %c0_38 = arith.constant 0 : index
    %c0_39 = arith.constant 0 : index
    %103 = vector.load %arg3[%c0_37, %c0_38, %c0_39] : memref<1x8x128xf32, #tpu.memory_space<vmem>>, vector<1x8x128xf32>
    %104 = vector.shape_cast %103 : vector<1x8x128xf32> to vector<8x128xf32>
    %105 = vector.shape_cast %102 : vector<8x128xf32> to vector<1x8x128xf32>
    tpu.vector_store %arg3[%c0_37, %c0_38, %c0_39], %105 {strides = array<i32>} : memref<1x8x128xf32, #tpu.memory_space<vmem>>, vector<1x8x128xf32>,
    return
  }
  func.func @transform_0(%arg0: i32) -> (i32, i32, i32) {
    %c0_i32 = arith.constant 0 : i32
    %c0_i32_0 = arith.constant 0 : i32
    %c0_i32_1 = arith.constant 0 : i32
    return %arg0, %c0_i32, %c0_i32_0 : i32, i32, i32
  }
  func.func @transform_1(%arg0: i32) -> (i32, i32, i32) {
    %c0_i32 = arith.constant 0 : i32
    %c0_i32_0 = arith.constant 0 : i32
    %c0_i32_1 = arith.constant 0 : i32
    %c0_i32_2 = arith.constant 0 : i32
    return %c0_i32, %c0_i32_0, %c0_i32_1 : i32, i32, i32
  }
  func.func @transform_2(%arg0: i32) -> (i32, i32, i32) {
    %c0_i32 = arith.constant 0 : i32
    %c0_i32_0 = arith.constant 0 : i32
    %c0_i32_1 = arith.constant 0 : i32
    return %arg0, %c0_i32, %c0_i32_0 : i32, i32, i32
  }
}

</mosaic_0001>

<llo_original>
// kernel: tpu_custom_call.1
$region0: #{tpu_custom_call.1}
  #allocation0 [shape = 'u32[]', space=smem, size = 0x4, offset = 0x4, fixed_abs, tag = 'smem constant byte address 0x4 - core index']
  #allocation1 [shape = 'u32[144,128]{1,0:T(1,128)}', space=vmem, size = 0x12000, scoped, tag = 'internal scratch']
  %s0 = inlined_call_operand.hbm [shape: f32[1,8,16], index: 0, kind: input, shape index: {}]
  %s1 = inlined_call_operand.hbm [shape: f32[4,128,128], index: 1, kind: input, shape index: {}]
  %s2 = inlined_call_operand.hbm [shape: f32[1,8,128], index: 2, kind: output, shape index: {}]
  %s3 = sld [smem:[#allocation0]]
  $region26: #{tpu_custom_call.1} parent=0
    _
  %s5 = ssub.s32 1, %s3
  %s6 = scalar_select 0, %s5, %s3
  $region1: #{tpu_custom_call.1} parent=0
    #allocation2 [shape = 'u8[4096]{0}', space=vmem, size = 0x1000, scoped, tag = 'input window, operand 0, single buffered']
    #allocation3 [shape = 's32[1]{0}', space=sflag, size = 0x4, scoped, tag = 'scoped memory for tpu_custom_call.1']
    #allocation4 [shape = 's32[1]{0}', space=sflag, size = 0x4, scoped, tag = 'scoped memory for tpu_custom_call.1']
    #allocation5 [shape = 'u8[262144]{0}', space=vmem, size = 0x40000, scoped, tag = 'input window, operand 1, single buffered']
    #allocation6 [shape = 's32[1]{0}', space=sflag, size = 0x4, scoped, tag = 'scoped memory for tpu_custom_call.1']
    #allocation7 [shape = 'u8[4096]{0}', space=vmem, size = 0x1000, scoped, tag = 'output window, operand 0, single buffered']
    %7 = vsyncpa [#allocation3], 0
    %8 = vsyncpa [#allocation6], 0
    %9 = vsyncpa [#allocation4], 0
    // Predicated region
    $region2: #{tpu_custom_call.1} parent=1 // pred_check
      _
    $region3: #{tpu_custom_call.1} parent=1 // pred_check_branch
      %11 = sbr.rel (0) target = $region5
    $region4: #{tpu_custom_call.1} parent=1 // pred_region
      %s13 = ssub.s32 128, 128
      %14 = vsyncadd [#allocation3], %s13
      %s16 = sshll.u32 [#allocation2], 4
      %s17 = int_to_ptr.vmem [resolvable:$true] %s16
      %19 = dma.hbm_to_vmem [thread:$0]  %s0, 128, %s17, [#allocation3]
    $region5: #{tpu_custom_call.1} parent=1 // pred_fallthru
      _
    // Predicated region
    $region6: #{tpu_custom_call.1} parent=1 // pred_check
      _
    $region7: #{tpu_custom_call.1} parent=1 // pred_check_branch
      %21 = sbr.rel (0) target = $region9
    $region8: #{tpu_custom_call.1} parent=1 // pred_region
      %s23 = ssub.s32 8192, 8192
      %24 = vsyncadd [#allocation6], %s23
      %s25 = sshll.u32 [#allocation5], 4
      %s26 = int_to_ptr.vmem [resolvable:$true] %s25
      %31 = dma.hbm_to_vmem [thread:$0]  %s1, 8192, %s26, [#allocation6], 128, 128, 8
    $region9: #{tpu_custom_call.1} parent=1 // pred_fallthru
      _
    // Predicated region
    $region10: #{tpu_custom_call.1} parent=1 // pred_check
      _
    $region11: #{tpu_custom_call.1} parent=1 // pred_check_branch
      %33 = sbr.rel (0) target = $region13
    $region12: #{tpu_custom_call.1} parent=1 // pred_region
      %34 = dma.done [#allocation3], 128
    $region13: #{tpu_custom_call.1} parent=1 // pred_fallthru
      _
    // Predicated region
    $region14: #{tpu_custom_call.1} parent=1 // pred_check
      _
    $region15: #{tpu_custom_call.1} parent=1 // pred_check_branch
      %36 = sbr.rel (0) target = $region17
    $region16: #{tpu_custom_call.1} parent=1 // pred_region
      %37 = dma.done [#allocation6], 8192
    $region17: #{tpu_custom_call.1} parent=1 // pred_fallthru
      _
    %v38 = vld [vmem:[#allocation5 + $0x78] sm:$0xff]
    %v39 = vld [vmem:[#allocation2] sm:$0xff]
    %v40 = vld [vmem:[#allocation5] sm:$0xff]
    %v41 = vld [vmem:[#allocation5 + $0x8] sm:$0xff]
    %vm42 = vcmask 130048
    %v44 = vsel %vm42, %v39, 0
    %46 = vmatprep.subr.mxu0 0.0
    %47 = vmatpush1.msra.mxu0 %v40
    %48 = vmatprep.subr.mxu0 0.0
    %49 = vmatpush1.msra.mxu0 %v41
    %50 = vmatprep.subr.mxu0 0.0
    %51 = vmatpush1.msra.mxu0 0.0
    %52 = vmatprep.subr.mxu0 0.0
    %53 = vmatpush1.msra.mxu0 0.0
    %54 = vmatprep.subr.mxu0 0.0
    %55 = vmatpush1.msra.mxu0 0.0
    %56 = vmatprep.subr.mxu0 0.0
    %57 = vmatpush1.msra.mxu0 0.0
    %58 = vmatprep.subr.mxu0 0.0
    %59 = vmatpush1.msra.mxu0 0.0
    %60 = vmatprep.subr.mxu0 0.0
    %61 = vmatpush1.msra.mxu0 0.0
    %62 = vmatprep.subr.mxu0 0.0
    %63 = vmatpush1.msra.mxu0 0.0
    %64 = vmatprep.subr.mxu0 0.0
    %65 = vmatpush1.msra.mxu0 0.0
    %66 = vmatprep.subr.mxu0 0.0
    %67 = vmatpush1.msra.mxu0 0.0
    %68 = vmatprep.subr.mxu0 0.0
    %69 = vmatpush1.msra.mxu0 0.0
    %70 = vmatprep.subr.mxu0 0.0
    %71 = vmatpush1.msra.mxu0 0.0
    %72 = vmatprep.subr.mxu0 0.0
    %73 = vmatpush1.msra.mxu0 0.0
    %74 = vmatprep.subr.mxu0 0.0
    %75 = vmatpush1.msra.mxu0 0.0
    %76 = vmatprep.subr.mxu0 0.0
    %77 = vmatpush1.msra.mxu0 0.0
    %78 = vmatprep.subr.mxu0 0.0
    %79 = vmatpush1.msra.mxu0 0.0
    %80 = vmatprep.subr.mxu0 0.0
    %81 = vmatpush1.msra.mxu0 0.0
    %82 = vmatprep.subr.mxu0 0.0
    %83 = vmatpush1.msra.mxu0 0.0
    %84 = vmatprep.subr.mxu0 0.0
    %85 = vmatpush1.msra.mxu0 0.0
    %86 = vmatprep.subr.mxu0 0.0
    %87 = vmatpush1.msra.mxu0 0.0
    %88 = vmatprep.subr.mxu0 0.0
    %89 = vmatpush1.msra.mxu0 0.0
    %90 = vmatprep.subr.mxu0 0.0
    %91 = vmatpush1.msra.mxu0 0.0
    %92 = vmatprep.subr.mxu0 0.0
    %93 = vmatpush1.msra.mxu0 0.0
    %94 = vmatprep.subr.mxu0 0.0
    %95 = vmatpush1.msra.mxu0 0.0
    %96 = vmatprep.subr.mxu0 0.0
    %97 = vmatpush1.msra.mxu0 0.0
    %98 = vmatprep.subr.mxu0 0.0
    %99 = vmatpush1.msra.mxu0 0.0
    %100 = vmatprep.subr.mxu0 0.0
    %101 = vmatpush1.msra.mxu0 0.0
    %102 = vmatprep.subr.mxu0 0.0
    %103 = vmatpush1.msra.mxu0 0.0
    %104 = vmatprep.subr.mxu0 0.0
    %105 = vmatpush1.msra.mxu0 0.0
    %106 = vmatprep.subr.mxu0 0.0
    %107 = vmatpush1.msra.mxu0 0.0
    %108 = vmatprep.subr.mxu0 0.0
    %109 = vmatpush1.msra.mxu0 0.0
    %110 = vmatprep.mubr.f32.mxu0 0.0
    %111 = vmatmul.mubr.f32.gmra.mrb[0].mxu0 %v44
    %v112 = vpop.f32.mrb[0].mxu0
    %v113 = vadd.f32 0.0, %v112
    %v114 = vpop.f32.mrb[0].mxu0
    %115 = vdwg.mxu0
    %v116 = vrot.slane %v113, 4
    %v117 = vadd.f32 %v113, %v116
    %v118 = vrot.slane %v117, 2
    %v119 = vadd.f32 %v117, %v118
    %v120 = vrot.slane %v119, 1
    %v121 = vadd.f32 %v119, %v120
    %v122 = vrcp.pop 8.0
    %v123 = vmul.f32 %v121, %v122
    %v124 = vmul.f32 %v113, %v113
    %v125 = vrot.slane %v124, 4
    %v126 = vadd.f32 %v124, %v125
    %v127 = vrot.slane %v126, 2
    %v128 = vadd.f32 %v126, %v127
    %v129 = vrot.slane %v128, 1
    %v130 = vadd.f32 %v128, %v129
    %v131 = vmul.f32 %v130, %v122
    %v132 = vmul.f32 %v123, %v123
    %v133 = vsub.f32 %v131, %v132
    %v134 = vmax.f32 %v133, 0.0
    %v135 = vadd.f32 %v134, 1e-05
    %v136 = vrsqrt.pop %v135
    %v137 = vmul.f32 %v38, %v136
    %v138 = vmul.f32 %v123, %v137
    %v140 = vrot.slane %v138, 5
    %v142 = vsub.f32 %v38, %v140
    %v143 = vlaneseq
    %v144 = vshrl.u32 %v143, 7
    %v145 = vsub.s32 0, %v144
    %v146 = vrot.slane %v137, %v145
    %v147 = vmul.f32 %v113, %v146
    %v148 = vlaneseq
    %v149 = vshrl.u32 %v148, 7
    %v150 = vsub.s32 3, %v149
    %v151 = vrot.slane %v142, %v150
    %v152 = vadd.f32 %v147, %v151
    %v153 = vmul.f32 %v152, 0.01
    %v154 = vmax.f32 %v152, %v153
    %s155 = scalar_lea.vmem [#allocation5], 128
    %v156 = vld [vmem:[%s155] sm:$0xff]
    %v157 = vld [vmem:[%s155 + $0x8] sm:$0xff]
    %v158 = vld [vmem:[%s155 + $0x10] sm:$0xff]
    %v159 = vld [vmem:[%s155 + $0x18] sm:$0xff]
    %v160 = vld [vmem:[%s155 + $0x20] sm:$0xff]
    %v161 = vld [vmem:[%s155 + $0x28] sm:$0xff]
    %v162 = vld [vmem:[%s155 + $0x30] sm:$0xff]
    %v163 = vld [vmem:[%s155 + $0x38] sm:$0xff]
    %v164 = vld [vmem:[%s155 + $0x40] sm:$0xff]
    %v165 = vld [vmem:[%s155 + $0x48] sm:$0xff]
    %v166 = vld [vmem:[%s155 + $0x50] sm:$0xff]
    %v167 = vld [vmem:[%s155 + $0x58] sm:$0xff]
    %v168 = vld [vmem:[%s155 + $0x60] sm:$0xff]
    %v169 = vld [vmem:[%s155 + $0x68] sm:$0xff]
    %v170 = vld [vmem:[%s155 + $0x70] sm:$0xff]
    %v171 = vld [vmem:[%s155 + $0x78] sm:$0xff]
    %172 = vmatprep.subr.mxu0 0.0
    %173 = vmatpush1.msra.mxu0 %v156
    %174 = vmatprep.subr.mxu0 0.0
    %175 = vmatpush1.msra.mxu0 %v157
    %176 = vmatprep.subr.mxu0 0.0
    %177 = vmatpush1.msra.mxu0 %v158
    %178 = vmatprep.subr.mxu0 0.0
    %179 = vmatpush1.msra.mxu0 %v159
    %180 = vmatprep.subr.mxu0 0.0
    %181 = vmatpush1.msra.mxu0 %v160
    %182 = vmatprep.subr.mxu0 0.0
    %183 = vmatpush1.msra.mxu0 %v161
    %184 = vmatprep.subr.mxu0 0.0
    %185 = vmatpush1.msra.mxu0 %v162
    %186 = vmatprep.subr.mxu0 0.0
    %187 = vmatpush1.msra.mxu0 %v163
    %188 = vmatprep.subr.mxu0 0.0
    %189 = vmatpush1.msra.mxu0 %v164
    %190 = vmatprep.subr.mxu0 0.0
    %191 = vmatpush1.msra.mxu0 %v165
    %192 = vmatprep.subr.mxu0 0.0
    %193 = vmatpush1.msra.mxu0 %v166
    %194 = vmatprep.subr.mxu0 0.0
    %195 = vmatpush1.msra.mxu0 %v167
    %196 = vmatprep.subr.mxu0 0.0
    %197 = vmatpush1.msra.mxu0 %v168
    %198 = vmatprep.subr.mxu0 0.0
    %199 = vmatpush1.msra.mxu0 %v169
    %200 = vmatprep.subr.mxu0 0.0
    %201 = vmatpush1.msra.mxu0 %v170
    %202 = vmatprep.subr.mxu0 0.0
    %203 = vmatpush1.msra.mxu0 %v171
    %204 = vmatprep.subr.mxu0 0.0
    %205 = vmatpush1.msra.mxu0 0.0
    %206 = vmatprep.subr.mxu0 0.0
    %207 = vmatpush1.msra.mxu0 0.0
    %208 = vmatprep.subr.mxu0 0.0
    %209 = vmatpush1.msra.mxu0 0.0
    %210 = vmatprep.subr.mxu0 0.0
    %211 = vmatpush1.msra.mxu0 0.0
    %212 = vmatprep.subr.mxu0 0.0
    %213 = vmatpush1.msra.mxu0 0.0
    %214 = vmatprep.subr.mxu0 0.0
    %215 = vmatpush1.msra.mxu0 0.0
    %216 = vmatprep.subr.mxu0 0.0
    %217 = vmatpush1.msra.mxu0 0.0
    %218 = vmatprep.subr.mxu0 0.0
    %219 = vmatpush1.msra.mxu0 0.0
    %220 = vmatprep.subr.mxu0 0.0
    %221 = vmatpush1.msra.mxu0 0.0
    %222 = vmatprep.subr.mxu0 0.0
    %223 = vmatpush1.msra.mxu0 0.0
    %224 = vmatprep.subr.mxu0 0.0
    %225 = vmatpush1.msra.mxu0 0.0
    %226 = vmatprep.subr.mxu0 0.0
    %227 = vmatpush1.msra.mxu0 0.0
    %228 = vmatprep.subr.mxu0 0.0
    %229 = vmatpush1.msra.mxu0 0.0
    %230 = vmatprep.subr.mxu0 0.0
    %231 = vmatpush1.msra.mxu0 0.0
    %232 = vmatprep.subr.mxu0 0.0
    %233 = vmatpush1.msra.mxu0 0.0
    %234 = vmatprep.subr.mxu0 0.0
    %235 = vmatpush1.msra.mxu0 0.0
    %236 = vmatprep.mubr.f32.mxu0 0.0
    %237 = vmatmul.mubr.f32.gmra.mrb[0].mxu0 %v154
    %v238 = vpop.f32.mrb[0].mxu0
    %v239 = vadd.f32 0.0, %v238
    %v240 = vpop.f32.mrb[0].mxu0
    %241 = vdwg.mxu0
    %v242 = vrot.slane %v239, 4
    %v243 = vadd.f32 %v239, %v242
    %v244 = vrot.slane %v243, 2
    %v245 = vadd.f32 %v243, %v244
    %v246 = vrot.slane %v245, 1
    %v247 = vadd.f32 %v245, %v246
    %v248 = vmul.f32 %v247, %v122
    %v249 = vmul.f32 %v239, %v239
    %v250 = vrot.slane %v249, 4
    %v251 = vadd.f32 %v249, %v250
    %v252 = vrot.slane %v251, 2
    %v253 = vadd.f32 %v251, %v252
    %v254 = vrot.slane %v253, 1
    %v255 = vadd.f32 %v253, %v254
    %v256 = vmul.f32 %v255, %v122
    %v257 = vmul.f32 %v248, %v248
    %v258 = vsub.f32 %v256, %v257
    %v259 = vmax.f32 %v258, 0.0
    %v260 = vadd.f32 %v259, 1e-05
    %v261 = vrsqrt.pop %v260
    %v262 = vmul.f32 %v38, %v261
    %v263 = vmul.f32 %v248, %v262
    %v265 = vrot.slane %v263, 5
    %v267 = vsub.f32 %v38, %v265
    %v268 = vlaneseq
    %v269 = vshrl.u32 %v268, 7
    %v270 = vsub.s32 1, %v269
    %v271 = vrot.slane %v262, %v270
    %v272 = vmul.f32 %v239, %v271
    %v273 = vlaneseq
    %v274 = vshrl.u32 %v273, 7
    %v275 = vsub.s32 4, %v274
    %v276 = vrot.slane %v267, %v275
    %v277 = vadd.f32 %v272, %v276
    %v278 = vmul.f32 %v277, 0.01
    %v279 = vmax.f32 %v277, %v278
    %s280 = scalar_lea.vmem [#allocation5], 256
    %v281 = vld [vmem:[%s280] sm:$0xff]
    %v282 = vld [vmem:[%s280 + $0x8] sm:$0xff]
    %v283 = vld [vmem:[%s280 + $0x10] sm:$0xff]
    %v284 = vld [vmem:[%s280 + $0x18] sm:$0xff]
    %v285 = vld [vmem:[%s280 + $0x20] sm:$0xff]
    %v286 = vld [vmem:[%s280 + $0x28] sm:$0xff]
    %v287 = vld [vmem:[%s280 + $0x30] sm:$0xff]
    %v288 = vld [vmem:[%s280 + $0x38] sm:$0xff]
    %v289 = vld [vmem:[%s280 + $0x40] sm:$0xff]
    %v290 = vld [vmem:[%s280 + $0x48] sm:$0xff]
    %v291 = vld [vmem:[%s280 + $0x50] sm:$0xff]
    %v292 = vld [vmem:[%s280 + $0x58] sm:$0xff]
    %v293 = vld [vmem:[%s280 + $0x60] sm:$0xff]
    %v294 = vld [vmem:[%s280 + $0x68] sm:$0xff]
    %v295 = vld [vmem:[%s280 + $0x70] sm:$0xff]
    %v296 = vld [vmem:[%s280 + $0x78] sm:$0xff]
    %297 = vmatprep.subr.mxu0 0.0
    %298 = vmatpush1.msra.mxu0 %v281
    %299 = vmatprep.subr.mxu0 0.0
    %300 = vmatpush1.msra.mxu0 %v282
    %301 = vmatprep.subr.mxu0 0.0
    %302 = vmatpush1.msra.mxu0 %v283
    %303 = vmatprep.subr.mxu0 0.0
    %304 = vmatpush1.msra.mxu0 %v284
    %305 = vmatprep.subr.mxu0 0.0
    %306 = vmatpush1.msra.mxu0 %v285
    %307 = vmatprep.subr.mxu0 0.0
    %308 = vmatpush1.msra.mxu0 %v286
    %309 = vmatprep.subr.mxu0 0.0
    %310 = vmatpush1.msra.mxu0 %v287
    %311 = vmatprep.subr.mxu0 0.0
    %312 = vmatpush1.msra.mxu0 %v288
    %313 = vmatprep.subr.mxu0 0.0
    %314 = vmatpush1.msra.mxu0 %v289
    %315 = vmatprep.subr.mxu0 0.0
    %316 = vmatpush1.msra.mxu0 %v290
    %317 = vmatprep.subr.mxu0 0.0
    %318 = vmatpush1.msra.mxu0 %v291
    %319 = vmatprep.subr.mxu0 0.0
    %320 = vmatpush1.msra.mxu0 %v292
    %321 = vmatprep.subr.mxu0 0.0
    %322 = vmatpush1.msra.mxu0 %v293
    %323 = vmatprep.subr.mxu0 0.0
    %324 = vmatpush1.msra.mxu0 %v294
    %325 = vmatprep.subr.mxu0 0.0
    %326 = vmatpush1.msra.mxu0 %v295
    %327 = vmatprep.subr.mxu0 0.0
    %328 = vmatpush1.msra.mxu0 %v296
    %329 = vmatprep.subr.mxu0 0.0
    %330 = vmatpush1.msra.mxu0 0.0
    %331 = vmatprep.subr.mxu0 0.0
    %332 = vmatpush1.msra.mxu0 0.0
    %333 = vmatprep.subr.mxu0 0.0
    %334 = vmatpush1.msra.mxu0 0.0
    %335 = vmatprep.subr.mxu0 0.0
    %336 = vmatpush1.msra.mxu0 0.0
    %337 = vmatprep.subr.mxu0 0.0
    %338 = vmatpush1.msra.mxu0 0.0
    %339 = vmatprep.subr.mxu0 0.0
    %340 = vmatpush1.msra.mxu0 0.0
    %341 = vmatprep.subr.mxu0 0.0
    %342 = vmatpush1.msra.mxu0 0.0
    %343 = vmatprep.subr.mxu0 0.0
    %344 = vmatpush1.msra.mxu0 0.0
    %345 = vmatprep.subr.mxu0 0.0
    %346 = vmatpush1.msra.mxu0 0.0
    %347 = vmatprep.subr.mxu0 0.0
    %348 = vmatpush1.msra.mxu0 0.0
    %349 = vmatprep.subr.mxu0 0.0
    %350 = vmatpush1.msra.mxu0 0.0
    %351 = vmatprep.subr.mxu0 0.0
    %352 = vmatpush1.msra.mxu0 0.0
    %353 = vmatprep.subr.mxu0 0.0
    %354 = vmatpush1.msra.mxu0 0.0
    %355 = vmatprep.subr.mxu0 0.0
    %356 = vmatpush1.msra.mxu0 0.0
    %357 = vmatprep.subr.mxu0 0.0
    %358 = vmatpush1.msra.mxu0 0.0
    %359 = vmatprep.subr.mxu0 0.0
    %360 = vmatpush1.msra.mxu0 0.0
    %361 = vmatprep.mubr.f32.mxu0 0.0
    %362 = vmatmul.mubr.f32.gmra.mrb[0].mxu0 %v279
    %v363 = vpop.f32.mrb[0].mxu0
    %v364 = vadd.f32 0.0, %v363
    %v365 = vpop.f32.mrb[0].mxu0
    %366 = vdwg.mxu0
    %v367 = vrot.slane %v364, 4
    %v368 = vadd.f32 %v364, %v367
    %v369 = vrot.slane %v368, 2
    %v370 = vadd.f32 %v368, %v369
    %v371 = vrot.slane %v370, 1
    %v372 = vadd.f32 %v370, %v371
    %v373 = vmul.f32 %v372, %v122
    %v374 = vmul.f32 %v364, %v364
    %v375 = vrot.slane %v374, 4
    %v376 = vadd.f32 %v374, %v375
    %v377 = vrot.slane %v376, 2
    %v378 = vadd.f32 %v376, %v377
    %v379 = vrot.slane %v378, 1
    %v380 = vadd.f32 %v378, %v379
    %v381 = vmul.f32 %v380, %v122
    %v382 = vmul.f32 %v373, %v373
    %v383 = vsub.f32 %v381, %v382
    %v384 = vmax.f32 %v383, 0.0
    %v385 = vadd.f32 %v384, 1e-05
    %v386 = vrsqrt.pop %v385
    %v387 = vmul.f32 %v38, %v386
    %v388 = vmul.f32 %v373, %v387
    %v390 = vrot.slane %v388, 5
    %v392 = vsub.f32 %v38, %v390
    %v393 = vlaneseq
    %v394 = vshrl.u32 %v393, 7
    %v395 = vsub.s32 2, %v394
    %v396 = vrot.slane %v387, %v395
    %v397 = vmul.f32 %v364, %v396
    %v398 = vlaneseq
    %v399 = vshrl.u32 %v398, 7
    %v400 = vsub.s32 5, %v399
    %v401 = vrot.slane %v392, %v400
    %v402 = vadd.f32 %v397, %v401
    %v403 = vmul.f32 %v402, 0.01
    %v404 = vmax.f32 %v402, %v403
    %s405 = scalar_lea.vmem [#allocation5], 384
    %v406 = vld [vmem:[%s405] sm:$0xff]
    %v407 = vld [vmem:[%s405 + $0x8] sm:$0xff]
    %v408 = vld [vmem:[%s405 + $0x10] sm:$0xff]
    %v409 = vld [vmem:[%s405 + $0x18] sm:$0xff]
    %v410 = vld [vmem:[%s405 + $0x20] sm:$0xff]
    %v411 = vld [vmem:[%s405 + $0x28] sm:$0xff]
    %v412 = vld [vmem:[%s405 + $0x30] sm:$0xff]
    %v413 = vld [vmem:[%s405 + $0x38] sm:$0xff]
    %v414 = vld [vmem:[%s405 + $0x40] sm:$0xff]
    %v415 = vld [vmem:[%s405 + $0x48] sm:$0xff]
    %v416 = vld [vmem:[%s405 + $0x50] sm:$0xff]
    %v417 = vld [vmem:[%s405 + $0x58] sm:$0xff]
    %v418 = vld [vmem:[%s405 + $0x60] sm:$0xff]
    %v419 = vld [vmem:[%s405 + $0x68] sm:$0xff]
    %v420 = vld [vmem:[%s405 + $0x70] sm:$0xff]
    %v421 = vld [vmem:[%s405 + $0x78] sm:$0xff]
    %v422 = vlaneseq
    %v423 = vshrl.u32 %v422, 7
    %v424 = vsub.s32 6, %v423
    %v425 = vrot.slane %v38, %v424
    %426 = vmatprep.subr.mxu0 0.0
    %427 = vmatpush1.msra.mxu0 %v406
    %428 = vmatprep.subr.mxu0 0.0
    %429 = vmatpush1.msra.mxu0 %v407
    %430 = vmatprep.subr.mxu0 0.0
    %431 = vmatpush1.msra.mxu0 %v408
    %432 = vmatprep.subr.mxu0 0.0
    %433 = vmatpush1.msra.mxu0 %v409
    %434 = vmatprep.subr.mxu0 0.0
    %435 = vmatpush1.msra.mxu0 %v410
    %436 = vmatprep.subr.mxu0 0.0
    %437 = vmatpush1.msra.mxu0 %v411
    %438 = vmatprep.subr.mxu0 0.0
    %439 = vmatpush1.msra.mxu0 %v412
    %440 = vmatprep.subr.mxu0 0.0
    %441 = vmatpush1.msra.mxu0 %v413
    %442 = vmatprep.subr.mxu0 0.0
    %443 = vmatpush1.msra.mxu0 %v414
    %444 = vmatprep.subr.mxu0 0.0
    %445 = vmatpush1.msra.mxu0 %v415
    %446 = vmatprep.subr.mxu0 0.0
    %447 = vmatpush1.msra.mxu0 %v416
    %448 = vmatprep.subr.mxu0 0.0
    %449 = vmatpush1.msra.mxu0 %v417
    %450 = vmatprep.subr.mxu0 0.0
    %451 = vmatpush1.msra.mxu0 %v418
    %452 = vmatprep.subr.mxu0 0.0
    %453 = vmatpush1.msra.mxu0 %v419
    %454 = vmatprep.subr.mxu0 0.0
    %455 = vmatpush1.msra.mxu0 %v420
    %456 = vmatprep.subr.mxu0 0.0
    %457 = vmatpush1.msra.mxu0 %v421
    %458 = vmatprep.subr.mxu0 0.0
    %459 = vmatpush1.msra.mxu0 0.0
    %460 = vmatprep.subr.mxu0 0.0
    %461 = vmatpush1.msra.mxu0 0.0
    %462 = vmatprep.subr.mxu0 0.0
    %463 = vmatpush1.msra.mxu0 0.0
    %464 = vmatprep.subr.mxu0 0.0
    %465 = vmatpush1.msra.mxu0 0.0
    %466 = vmatprep.subr.mxu0 0.0
    %467 = vmatpush1.msra.mxu0 0.0
    %468 = vmatprep.subr.mxu0 0.0
    %469 = vmatpush1.msra.mxu0 0.0
    %470 = vmatprep.subr.mxu0 0.0
    %471 = vmatpush1.msra.mxu0 0.0
    %472 = vmatprep.subr.mxu0 0.0
    %473 = vmatpush1.msra.mxu0 0.0
    %474 = vmatprep.subr.mxu0 0.0
    %475 = vmatpush1.msra.mxu0 0.0
    %476 = vmatprep.subr.mxu0 0.0
    %477 = vmatpush1.msra.mxu0 0.0
    %478 = vmatprep.subr.mxu0 0.0
    %479 = vmatpush1.msra.mxu0 0.0
    %480 = vmatprep.subr.mxu0 0.0
    %481 = vmatpush1.msra.mxu0 0.0
    %482 = vmatprep.subr.mxu0 0.0
    %483 = vmatpush1.msra.mxu0 0.0
    %484 = vmatprep.subr.mxu0 0.0
    %485 = vmatpush1.msra.mxu0 0.0
    %486 = vmatprep.subr.mxu0 0.0
    %487 = vmatpush1.msra.mxu0 0.0
    %488 = vmatprep.subr.mxu0 0.0
    %489 = vmatpush1.msra.mxu0 0.0
    %490 = vmatprep.mubr.f32.mxu0 0.0
    %491 = vmatmul.mubr.f32.gmra.mrb[0].mxu0 %v404
    %v492 = vpop.f32.mrb[0].mxu0
    %v493 = vadd.f32 %v425, %v492
    %v494 = vpop.f32.mrb[0].mxu0
    %495 = vdwg.mxu0
    %496 = vst [vmem:[#allocation7] sm:$0xff] %v493
    // Predicated region
    $region18: #{tpu_custom_call.1} parent=1 // pred_check
      _
    $region19: #{tpu_custom_call.1} parent=1 // pred_check_branch
      %498 = sbr.rel (0) target = $region21
    $region20: #{tpu_custom_call.1} parent=1 // pred_region
      %s500 = ssub.s32 128, 128
      %501 = vsyncadd [#allocation4], %s500
      %s503 = sshll.u32 [#allocation7], 4
      %s504 = int_to_ptr.vmem [resolvable:$true] %s503
      %506 = dma.vmem_to_hbm [thread:$0]  %s504, 128, %s2, [#allocation4]
    $region21: #{tpu_custom_call.1} parent=1 // pred_fallthru
      _
    // Predicated region
    $region22: #{tpu_custom_call.1} parent=1 // pred_check
      _
    $region23: #{tpu_custom_call.1} parent=1 // pred_check_branch
      %508 = sbr.rel (0) target = $region25
    $region24: #{tpu_custom_call.1} parent=1 // pred_region
      %509 = dma.done [#allocation4], 128
    $region25: #{tpu_custom_call.1} parent=1 // pred_fallthru
      _
    %510 = vsyncpa [#allocation3], 1
    %511 = vsyncpa [#allocation6], 1
    %512 = vsyncpa [#allocation4], 1

</llo_original>
